<compile_context>
chip_gen: v5e
topology: v5e:2x2
jax: 0.10.0
libtpu: 0.0.40
codegen_flags: <defaults>
</compile_context>

<pallas_src>
import functools
import math

import jax
import jax.numpy as jnp
from jax.experimental import pallas as pl
from jax.experimental.pallas import tpu as pltpu


def _round_up(x, m):
    return ((x + m - 1) // m) * m


def _fused_mlp_kernel(*refs, n_layers, compute_dtype):
    # refs = (x_ref, w_0..w_{L-1}, b_0..b_{L-1}, o_ref)
    # x_ref: (TILE_N, D0) f32
    # w_l  : (Dl, Dl+1) compute_dtype  (VMEM-resident, constant index_map)
    # b_l  : (1, Dl+1)  f32            (VMEM-resident)
    # o_ref: (TILE_N, DL) f32
    x_ref = refs[0]
    w_refs = refs[1:1 + n_layers]
    b_refs = refs[1 + n_layers:1 + 2 * n_layers]
    o_ref = refs[1 + 2 * n_layers]

    h = x_ref[...]
    for l in range(n_layers):              # unrolled: n_layers is small & static
        acc = jnp.dot(h.astype(compute_dtype), w_refs[l][...],
                      preferred_element_type=jnp.float32)
        acc = acc + b_refs[l][...]          # (1, Dl+1) broadcast, f32 bias add
        if l < n_layers - 1:
            acc = jnp.maximum(acc, 0.0)     # ReLU on all layers except the last
        h = acc
    o_ref[...] = h.astype(o_ref.dtype)


def mlp_forward(x, params, *, tile_n_max=512, weight_dtype=jnp.bfloat16):
    """Fused MLP forward (ReLU after every layer except the last).

    x: (N, in_dim) f32.  params: list of (W, b) with W shaped (in, out),
    i.e. transposed relative to PyTorch's nn.Linear weight.
    """
    n, in_dim = x.shape
    n_layers = len(params)
    num_classes = params[-1][0].shape[1]

    # Per-layer lane-dense padded widths; d_pads[l] == padded fan_in of layer l
    # and padded fan_out of layer l-1 (out_{l-1} == in_l), so shapes chain.
    dims = [in_dim] + [w.shape[1] for w, _ in params]
    d_pads = [_round_up(dd, 128) for dd in dims]

    w_pads = [
        jnp.pad(w, ((0, d_pads[l] - w.shape[0]),
                    (0, d_pads[l + 1] - w.shape[1]))).astype(weight_dtype)
        for l, (w, _) in enumerate(params)]                    # (Dl, Dl+1)
    b_pads = [
        jnp.pad(b, (0, d_pads[l + 1] - b.shape[0]))
          .reshape(1, d_pads[l + 1]).astype(jnp.float32)
        for l, (_, b) in enumerate(params)]                    # (1, Dl+1)

    w_itemsize = jnp.dtype(weight_dtype).itemsize
    # Resident weights/biases (count x2: conservative double-buffer alloc),
    # biases are sublane-padded to 8 rows in VMEM.
    weight_bytes = 2 * sum(int(w.size) * w_itemsize for w in w_pads)
    bias_bytes = 2 * sum(8 * w.shape[1] * 4 for w in w_pads)

    def act_bytes(t):
        # x tile + out tile, double-buffered, f32.
        return 2 * t * (d_pads[0] + d_pads[-1]) * 4

    tile_n = min(tile_n_max, _round_up(n, 8))
    while tile_n > 128 and (weight_bytes + bias_bytes
                            + act_bytes(tile_n)) > (48 << 20):
        tile_n = _round_up(tile_n // 2, 8)

    n_pad = _round_up(n, tile_n)
    x_p = jnp.pad(x, ((0, n_pad - n), (0, d_pads[0] - in_dim)))  # (N_pad, D0)

    vmem_est = weight_bytes + bias_bytes + act_bytes(tile_n)
    compiler_kwargs = dict(dimension_semantics=("parallel",))
    if vmem_est > (32 << 20):
        compiler_kwargs["vmem_limit_bytes"] = min(vmem_est + (4 << 20),
                                                  64 << 20)

    kernel = functools.partial(
        _fused_mlp_kernel, n_layers=n_layers, compute_dtype=weight_dtype)

    in_specs = [pl.BlockSpec((tile_n, d_pads[0]), lambda i: (i, 0))]   # x tile
    in_specs += [pl.BlockSpec(w.shape, lambda i: (0, 0)) for w in w_pads]
    in_specs += [pl.BlockSpec(b.shape, lambda i: (0, 0)) for b in b_pads]

    out_p = pl.pallas_call(
        kernel,
        out_shape=jax.ShapeDtypeStruct((n_pad, d_pads[-1]), x.dtype),
        grid_spec=pltpu.PrefetchScalarGridSpec(
            num_scalar_prefetch=0,
            grid=(n_pad // tile_n,),
            in_specs=in_specs,
            out_specs=pl.BlockSpec((tile_n, d_pads[-1]), lambda i: (i, 0)),
        ),
        compiler_params=pltpu.CompilerParams(**compiler_kwargs),
    )(x_p, *w_pads, *b_pads)

    return out_p[:n, :num_classes]


def init_mlp_params(key, in_dim, num_layers, num_hidden, num_classes):
    """Layer shapes match the PyTorch module:
    Linear(in, hidden), num_layers x Linear(hidden, hidden),
    Linear(hidden, classes); PyTorch-default U(-1/sqrt(fan_in), +) init.
    Weights stored as (fan_in, fan_out) so forward is x @ W + b."""
    dims = [in_dim] + [num_hidden] * (num_layers + 1) + [num_classes]
    params = []
    for fan_in, fan_out in zip(dims[:-1], dims[1:]):
        key, kw, kb = jax.random.split(key, 3)
        bound = 1.0 / math.sqrt(fan_in)
        w = jax.random.uniform(kw, (fan_in, fan_out), jnp.float32,
                               minval=-bound, maxval=bound)
        b = jax.random.uniform(kb, (fan_out,), jnp.float32,
                               minval=-bound, maxval=bound)
        params.append((w, b))
    return params


if __name__ == "__main__":
    # Small shapes consistent with the module: N nodes with in_dim features.
    # TODO(synk): self.g (DGL graph) is unused in MLP.forward, so it has no
    # kernel equivalent here.
    N, IN_DIM, NUM_LAYERS, NUM_HIDDEN, NUM_CLASSES = 8, 16, 2, 32, 4

    key = jax.random.PRNGKey(0)
    key, kx = jax.random.split(key)
    x = jax.random.normal(kx, (N, IN_DIM), jnp.float32)

    params = init_mlp_params(key, IN_DIM, NUM_LAYERS, NUM_HIDDEN, NUM_CLASSES)

    out = jax.jit(mlp_forward)(x, params)
    out = jax.block_until_ready(out)

    # Reference in plain JAX, mirroring the kernel's bf16 matmul inputs with
    # f32 accumulation / epilogue.
    h_ref = x
    for i, (w, b) in enumerate(params):
        acc = jnp.dot(h_ref.astype(jnp.bfloat16), w.astype(jnp.bfloat16),
                      preferred_element_type=jnp.float32) + b
        h_ref = jnp.maximum(acc, 0.0) if i < len(params) - 1 else acc
    ref = h_ref

    assert out.shape == (N, NUM_CLASSES)
    assert jnp.allclose(out, ref, atol=1e-2, rtol=1e-2), (
        float(jnp.max(jnp.abs(out - ref))))
    print("KERNEL_OK")
</pallas_src>

<mosaic_0001>
module attributes {stable_mosaic.version = 11 : i64} {
  func.func @_fused_mlp_kernel(%arg0: i32, %arg1: memref<8x128xf32, #tpu.memory_space<vmem>>, %arg2: memref<128x128xbf16, #tpu.memory_space<vmem>>, %arg3: memref<128x128xbf16, #tpu.memory_space<vmem>>, %arg4: memref<128x128xbf16, #tpu.memory_space<vmem>>, %arg5: memref<128x128xbf16, #tpu.memory_space<vmem>>, %arg6: memref<1x128xf32, #tpu.memory_space<vmem>>, %arg7: memref<1x128xf32, #tpu.memory_space<vmem>>, %arg8: memref<1x128xf32, #tpu.memory_space<vmem>>, %arg9: memref<1x128xf32, #tpu.memory_space<vmem>>, %arg10: memref<8x128xf32, #tpu.memory_space<vmem>>) attributes {dimension_semantics = [#tpu.dimension_semantics<parallel>], iteration_bounds = array<i64: 1>, scalar_prefetch = 0 : i64, scratch_operands = 0 : i64, tpu.core_type = #tpu.core_type<tc>, window_params = [{transform_indices = @transform_0, window_bounds = array<i64: 8, 128>}, {pipeline_mode = #tpu.pipeline_mode<synchronous>, transform_indices = @transform_1, window_bounds = array<i64: 128, 128>}, {pipeline_mode = #tpu.pipeline_mode<synchronous>, transform_indices = @transform_2, window_bounds = array<i64: 128, 128>}, {pipeline_mode = #tpu.pipeline_mode<synchronous>, transform_indices = @transform_3, window_bounds = array<i64: 128, 128>}, {pipeline_mode = #tpu.pipeline_mode<synchronous>, transform_indices = @transform_4, window_bounds = array<i64: 128, 128>}, {pipeline_mode = #tpu.pipeline_mode<synchronous>, transform_indices = @transform_5, window_bounds = array<i64: 1, 128>}, {pipeline_mode = #tpu.pipeline_mode<synchronous>, transform_indices = @transform_6, window_bounds = array<i64: 1, 128>}, {pipeline_mode = #tpu.pipeline_mode<synchronous>, transform_indices = @transform_7, window_bounds = array<i64: 1, 128>}, {pipeline_mode = #tpu.pipeline_mode<synchronous>, transform_indices = @transform_8, window_bounds = array<i64: 1, 128>}, {transform_indices = @transform_9, window_bounds = array<i64: 8, 128>}]} {
    %c0 = arith.constant 0 : index
    %c0_0 = arith.constant 0 : index
    %0 = vector.load %arg1[%c0, %c0_0] : memref<8x128xf32, #tpu.memory_space<vmem>>, vector<8x128xf32>
    %1 = arith.truncf %0 : vector<8x128xf32> to vector<8x128xbf16>
    %c0_1 = arith.constant 0 : index
    %c0_2 = arith.constant 0 : index
    %2 = vector.load %arg2[%c0_1, %c0_2] : memref<128x128xbf16, #tpu.memory_space<vmem>>, vector<128x128xbf16>
    %cst = arith.constant dense<0.000000e+00> : vector<8x128xf32>
    %3 = tpu.matmul %1, %2, %cst {dimension_numbers = #tpu.dot_dimension_numbers<[1], [0], [0], [1], [0, 0, 1, 1], [], []>} : vector<8x128xbf16>, vector<128x128xbf16>, vector<8x128xf32> -> vector<8x128xf32>
    %c0_3 = arith.constant 0 : index
    %c0_4 = arith.constant 0 : index
    %4 = vector.load %arg6[%c0_3, %c0_4] : memref<1x128xf32, #tpu.memory_space<vmem>>, vector<1x128xf32>
    %5 = vector.broadcast %4 : vector<1x128xf32> to vector<8x128xf32>
    %6 = arith.addf %3, %5 : vector<8x128xf32>
    %cst_5 = arith.constant 0.000000e+00 : f32
    %7 = vector.broadcast %cst_5 : f32 to vector<8x128xf32>
    %8 = arith.maximumf %6, %7 : vector<8x128xf32>
    %9 = arith.truncf %8 : vector<8x128xf32> to vector<8x128xbf16>
    %c0_6 = arith.constant 0 : index
    %c0_7 = arith.constant 0 : index
    %10 = vector.load %arg3[%c0_6, %c0_7] : memref<128x128xbf16, #tpu.memory_space<vmem>>, vector<128x128xbf16>
    %cst_8 = arith.constant dense<0.000000e+00> : vector<8x128xf32>
    %11 = tpu.matmul %9, %10, %cst_8 {dimension_numbers = #tpu.dot_dimension_numbers<[1], [0], [0], [1], [0, 0, 1, 1], [], []>} : vector<8x128xbf16>, vector<128x128xbf16>, vector<8x128xf32> -> vector<8x128xf32>
    %c0_9 = arith.constant 0 : index
    %c0_10 = arith.constant 0 : index
    %12 = vector.load %arg7[%c0_9, %c0_10] : memref<1x128xf32, #tpu.memory_space<vmem>>, vector<1x128xf32>
    %13 = vector.broadcast %12 : vector<1x128xf32> to vector<8x128xf32>
    %14 = arith.addf %11, %13 : vector<8x128xf32>
    %cst_11 = arith.constant 0.000000e+00 : f32
    %15 = vector.broadcast %cst_11 : f32 to vector<8x128xf32>
    %16 = arith.maximumf %14, %15 : vector<8x128xf32>
    %17 = arith.truncf %16 : vector<8x128xf32> to vector<8x128xbf16>
    %c0_12 = arith.constant 0 : index
    %c0_13 = arith.constant 0 : index
    %18 = vector.load %arg4[%c0_12, %c0_13] : memref<128x128xbf16, #tpu.memory_space<vmem>>, vector<128x128xbf16>
    %cst_14 = arith.constant dense<0.000000e+00> : vector<8x128xf32>
    %19 = tpu.matmul %17, %18, %cst_14 {dimension_numbers = #tpu.dot_dimension_numbers<[1], [0], [0], [1], [0, 0, 1, 1], [], []>} : vector<8x128xbf16>, vector<128x128xbf16>, vector<8x128xf32> -> vector<8x128xf32>
    %c0_15 = arith.constant 0 : index
    %c0_16 = arith.constant 0 : index
    %20 = vector.load %arg8[%c0_15, %c0_16] : memref<1x128xf32, #tpu.memory_space<vmem>>, vector<1x128xf32>
    %21 = vector.broadcast %20 : vector<1x128xf32> to vector<8x128xf32>
    %22 = arith.addf %19, %21 : vector<8x128xf32>
    %cst_17 = arith.constant 0.000000e+00 : f32
    %23 = vector.broadcast %cst_17 : f32 to vector<8x128xf32>
    %24 = arith.maximumf %22, %23 : vector<8x128xf32>
    %25 = arith.truncf %24 : vector<8x128xf32> to vector<8x128xbf16>
    %c0_18 = arith.constant 0 : index
    %c0_19 = arith.constant 0 : index
    %26 = vector.load %arg5[%c0_18, %c0_19] : memref<128x128xbf16, #tpu.memory_space<vmem>>, vector<128x128xbf16>
    %cst_20 = arith.constant dense<0.000000e+00> : vector<8x128xf32>
    %27 = tpu.matmul %25, %26, %cst_20 {dimension_numbers = #tpu.dot_dimension_numbers<[1], [0], [0], [1], [0, 0, 1, 1], [], []>} : vector<8x128xbf16>, vector<128x128xbf16>, vector<8x128xf32> -> vector<8x128xf32>
    %c0_21 = arith.constant 0 : index
    %c0_22 = arith.constant 0 : index
    %28 = vector.load %arg9[%c0_21, %c0_22] : memref<1x128xf32, #tpu.memory_space<vmem>>, vector<1x128xf32>
    %29 = vector.broadcast %28 : vector<1x128xf32> to vector<8x128xf32>
    %30 = arith.addf %27, %29 : vector<8x128xf32>
    %c0_23 = arith.constant 0 : index
    %c0_24 = arith.constant 0 : index
    %31 = vector.load %arg10[%c0_23, %c0_24] : memref<8x128xf32, #tpu.memory_space<vmem>>, vector<8x128xf32>
    tpu.vector_store %arg10[%c0_23, %c0_24], %30 {strides = array<i32>} : memref<8x128xf32, #tpu.memory_space<vmem>>, vector<8x128xf32>,
    return
  }
  func.func @transform_0(%arg0: i32) -> (i32, i32) {
    %c0_i32 = arith.constant 0 : i32
    %c0_i32_0 = arith.constant 0 : i32
    return %arg0, %c0_i32 : i32, i32
  }
  func.func @transform_1(%arg0: i32) -> (i32, i32) {
    %c0_i32 = arith.constant 0 : i32
    %c0_i32_0 = arith.constant 0 : i32
    %c0_i32_1 = arith.constant 0 : i32
    return %c0_i32, %c0_i32_0 : i32, i32
  }
  func.func @transform_2(%arg0: i32) -> (i32, i32) {
    %c0_i32 = arith.constant 0 : i32
    %c0_i32_0 = arith.constant 0 : i32
    %c0_i32_1 = arith.constant 0 : i32
    return %c0_i32, %c0_i32_0 : i32, i32
  }
  func.func @transform_3(%arg0: i32) -> (i32, i32) {
    %c0_i32 = arith.constant 0 : i32
    %c0_i32_0 = arith.constant 0 : i32
    %c0_i32_1 = arith.constant 0 : i32
    return %c0_i32, %c0_i32_0 : i32, i32
  }
  func.func @transform_4(%arg0: i32) -> (i32, i32) {
    %c0_i32 = arith.constant 0 : i32
    %c0_i32_0 = arith.constant 0 : i32
    %c0_i32_1 = arith.constant 0 : i32
    return %c0_i32, %c0_i32_0 : i32, i32
  }
  func.func @transform_5(%arg0: i32) -> (i32, i32) {
    %c0_i32 = arith.constant 0 : i32
    %c0_i32_0 = arith.constant 0 : i32
    %c0_i32_1 = arith.constant 0 : i32
    return %c0_i32, %c0_i32_0 : i32, i32
  }
  func.func @transform_6(%arg0: i32) -> (i32, i32) {
    %c0_i32 = arith.constant 0 : i32
    %c0_i32_0 = arith.constant 0 : i32
    %c0_i32_1 = arith.constant 0 : i32
    return %c0_i32, %c0_i32_0 : i32, i32
  }
  func.func @transform_7(%arg0: i32) -> (i32, i32) {
    %c0_i32 = arith.constant 0 : i32
    %c0_i32_0 = arith.constant 0 : i32
    %c0_i32_1 = arith.constant 0 : i32
    return %c0_i32, %c0_i32_0 : i32, i32
  }
  func.func @transform_8(%arg0: i32) -> (i32, i32) {
    %c0_i32 = arith.constant 0 : i32
    %c0_i32_0 = arith.constant 0 : i32
    %c0_i32_1 = arith.constant 0 : i32
    return %c0_i32, %c0_i32_0 : i32, i32
  }
  func.func @transform_9(%arg0: i32) -> (i32, i32) {
    %c0_i32 = arith.constant 0 : i32
    %c0_i32_0 = arith.constant 0 : i32
    return %arg0, %c0_i32 : i32, i32
  }
}

</mosaic_0001>

<llo_original>
// kernel: mlp_forward.1
$region0: #{mlp_forward.1}
  #allocation0 [shape = 'u32[]', space=smem, size = 0x4, offset = 0x4, fixed_abs, tag = 'smem constant byte address 0x4 - core index']
  #allocation1 [shape = 'u32[72,128]{1,0:T(1,128)}', space=vmem, size = 0x9000, scoped, tag = 'internal scratch']
  %s0 = inlined_call_operand.vmem [shape: f32[8,128], index: 0, kind: input, shape index: {}]
  %s1 = inlined_call_operand.vmem [shape: bf16[128,128], index: 1, kind: input, shape index: {}]
  %s2 = inlined_call_operand.vmem [shape: bf16[128,128], index: 2, kind: input, shape index: {}]
  %s3 = inlined_call_operand.vmem [shape: bf16[128,128], index: 3, kind: input, shape index: {}]
  %s4 = inlined_call_operand.vmem [shape: bf16[128,128], index: 4, kind: input, shape index: {}]
  %s5 = inlined_call_operand.vmem [shape: f32[1,128], index: 5, kind: input, shape index: {}]
  %s6 = inlined_call_operand.vmem [shape: f32[1,128], index: 6, kind: input, shape index: {}]
  %s7 = inlined_call_operand.vmem [shape: f32[1,128], index: 7, kind: input, shape index: {}]
  %s8 = inlined_call_operand.vmem [shape: f32[1,128], index: 8, kind: input, shape index: {}]
  %s9 = inlined_call_operand.vmem [shape: f32[8,128], index: 9, kind: output, shape index: {}]
  %s10 = sld [smem:[#allocation0]]
  $region46: #{mlp_forward.1} parent=0
    _
  %s12 = ssub.s32 1, %s10
  %s13 = scalar_select 0, %s12, %s10
  // Predicated region
  $region2: #{mlp_forward.1} parent=0 // pred_check
    _
  $region3: #{mlp_forward.1} parent=0 // pred_check_branch
    %15 = sbr.rel (0) target = $region5
  $region4: #{mlp_forward.1} parent=0 // pred_region
    _
  $region5: #{mlp_forward.1} parent=0 // pred_fallthru
    _
  // Predicated region
  $region6: #{mlp_forward.1} parent=0 // pred_check
    _
  $region7: #{mlp_forward.1} parent=0 // pred_check_branch
    %17 = sbr.rel (0) target = $region9
  $region8: #{mlp_forward.1} parent=0 // pred_region
    _
  $region9: #{mlp_forward.1} parent=0 // pred_fallthru
    _
  // Predicated region
  $region10: #{mlp_forward.1} parent=0 // pred_check
    _
  $region11: #{mlp_forward.1} parent=0 // pred_check_branch
    %19 = sbr.rel (0) target = $region13
  $region12: #{mlp_forward.1} parent=0 // pred_region
    _
  $region13: #{mlp_forward.1} parent=0 // pred_fallthru
    _
  // Predicated region
  $region14: #{mlp_forward.1} parent=0 // pred_check
    _
  $region15: #{mlp_forward.1} parent=0 // pred_check_branch
    %21 = sbr.rel (0) target = $region17
  $region16: #{mlp_forward.1} parent=0 // pred_region
    _
  $region17: #{mlp_forward.1} parent=0 // pred_fallthru
    _
  // Predicated region
  $region18: #{mlp_forward.1} parent=0 // pred_check
    _
  $region19: #{mlp_forward.1} parent=0 // pred_check_branch
    %23 = sbr.rel (0) target = $region21
  $region20: #{mlp_forward.1} parent=0 // pred_region
    _
  $region21: #{mlp_forward.1} parent=0 // pred_fallthru
    _
  // Predicated region
  $region22: #{mlp_forward.1} parent=0 // pred_check
    _
  $region23: #{mlp_forward.1} parent=0 // pred_check_branch
    %25 = sbr.rel (0) target = $region25
  $region24: #{mlp_forward.1} parent=0 // pred_region
    _
  $region25: #{mlp_forward.1} parent=0 // pred_fallthru
    _
  // Predicated region
  $region26: #{mlp_forward.1} parent=0 // pred_check
    _
  $region27: #{mlp_forward.1} parent=0 // pred_check_branch
    %27 = sbr.rel (0) target = $region29
  $region28: #{mlp_forward.1} parent=0 // pred_region
    _
  $region29: #{mlp_forward.1} parent=0 // pred_fallthru
    _
  // Predicated region
  $region30: #{mlp_forward.1} parent=0 // pred_check
    _
  $region31: #{mlp_forward.1} parent=0 // pred_check_branch
    %29 = sbr.rel (0) target = $region33
  $region32: #{mlp_forward.1} parent=0 // pred_region
    _
  $region33: #{mlp_forward.1} parent=0 // pred_fallthru
    _
  // Predicated region
  $region34: #{mlp_forward.1} parent=0 // pred_check
    _
  $region35: #{mlp_forward.1} parent=0 // pred_check_branch
    %31 = sbr.rel (0) target = $region37
  $region36: #{mlp_forward.1} parent=0 // pred_region
    _
  $region37: #{mlp_forward.1} parent=0 // pred_fallthru
    _
  %v32 = vld [vmem:[%s0] sm:$0xff]
  %v33 = vpack.c.bf16 %v32, %v32
  %v34 = vld [vmem:[%s1] sm:$0xf]
  %v35 = vld [vmem:[%s1 + $0x4] sm:$0xf]
  %v36 = vld [vmem:[%s1 + $0x8] sm:$0xf]
  %v37 = vld [vmem:[%s1 + $0xc] sm:$0xf]
  %v38 = vld [vmem:[%s1 + $0x10] sm:$0xf]
  %v39 = vld [vmem:[%s1 + $0x14] sm:$0xf]
  %v40 = vld [vmem:[%s1 + $0x18] sm:$0xf]
  %v41 = vld [vmem:[%s1 + $0x1c] sm:$0xf]
  %v42 = vld [vmem:[%s1 + $0x20] sm:$0xf]
  %v43 = vld [vmem:[%s1 + $0x24] sm:$0xf]
  %v44 = vld [vmem:[%s1 + $0x28] sm:$0xf]
  %v45 = vld [vmem:[%s1 + $0x2c] sm:$0xf]
  %v46 = vld [vmem:[%s1 + $0x30] sm:$0xf]
  %v47 = vld [vmem:[%s1 + $0x34] sm:$0xf]
  %v48 = vld [vmem:[%s1 + $0x38] sm:$0xf]
  %v49 = vld [vmem:[%s1 + $0x3c] sm:$0xf]
  %v50 = vld [vmem:[%s5] sm:$0x1]
  %v52 = vperm.slane %v50, 0
  %v70 = vunpack.c.l.b16 %v34
  %v71 = vunpack.c.l.b16 %v35
  %v72 = vunpack.c.l.b16 %v36
  %v73 = vunpack.c.l.b16 %v37
  %v74 = vunpack.c.l.b16 %v38
  %v75 = vunpack.c.l.b16 %v39
  %v76 = vunpack.c.l.b16 %v40
  %v77 = vunpack.c.l.b16 %v41
  %v78 = vunpack.c.l.b16 %v42
  %v79 = vunpack.c.l.b16 %v43
  %v80 = vunpack.c.l.b16 %v44
  %v81 = vunpack.c.l.b16 %v45
  %v82 = vunpack.c.l.b16 %v46
  %v83 = vunpack.c.l.b16 %v47
  %v84 = vunpack.c.l.b16 %v48
  %v85 = vunpack.c.l.b16 %v49
  %v86 = vpack.c.b16 %v71, %v70
  %v87 = vpack.c.b16 %v73, %v72
  %v88 = vpack.c.b16 %v75, %v74
  %v89 = vpack.c.b16 %v77, %v76
  %v90 = vpack.c.b16 %v79, %v78
  %v91 = vpack.c.b16 %v81, %v80
  %v92 = vpack.c.b16 %v83, %v82
  %v93 = vpack.c.b16 %v85, %v84
  %102 = vmatpush.bf16.msra.mxu0 %v93
  %103 = vmatpush.bf16.msra.mxu0 %v92
  %104 = vmatpush.bf16.msra.mxu0 %v91
  %105 = vmatpush.bf16.msra.mxu0 %v90
  %106 = vmatpush.bf16.msra.mxu0 %v89
  %107 = vmatpush.bf16.msra.mxu0 %v88
  %108 = vmatpush.bf16.msra.mxu0 %v87
  %109 = vmatpush.bf16.msra.mxu0 %v86
  %110 = vmatmul.bf16.gmra.mxu0 %v33
  %v111 = vpop.f32.mrf.mxu0
  %v112 = vadd.f32 %v52, %v111
  %v113 = vpop.f32.mrf.mxu0
  %114 = vdwg.mxu0
  %v115 = vmax.f32 %v112, 0.0
  %v116 = vpack.c.bf16 %v115, %v115
  %v117 = vld [vmem:[%s2] sm:$0xf]
  %v118 = vld [vmem:[%s2 + $0x4] sm:$0xf]
  %v119 = vld [vmem:[%s2 + $0x8] sm:$0xf]
  %v120 = vld [vmem:[%s2 + $0xc] sm:$0xf]
  %v121 = vld [vmem:[%s2 + $0x10] sm:$0xf]
  %v122 = vld [vmem:[%s2 + $0x14] sm:$0xf]
  %v123 = vld [vmem:[%s2 + $0x18] sm:$0xf]
  %v124 = vld [vmem:[%s2 + $0x1c] sm:$0xf]
  %v125 = vld [vmem:[%s2 + $0x20] sm:$0xf]
  %v126 = vld [vmem:[%s2 + $0x24] sm:$0xf]
  %v127 = vld [vmem:[%s2 + $0x28] sm:$0xf]
  %v128 = vld [vmem:[%s2 + $0x2c] sm:$0xf]
  %v129 = vld [vmem:[%s2 + $0x30] sm:$0xf]
  %v130 = vld [vmem:[%s2 + $0x34] sm:$0xf]
  %v131 = vld [vmem:[%s2 + $0x38] sm:$0xf]
  %v132 = vld [vmem:[%s2 + $0x3c] sm:$0xf]
  %v133 = vld [vmem:[%s6] sm:$0x1]
  %v135 = vperm.slane %v133, 0
  %v153 = vunpack.c.l.b16 %v117
  %v154 = vunpack.c.l.b16 %v118
  %v155 = vunpack.c.l.b16 %v119
  %v156 = vunpack.c.l.b16 %v120
  %v157 = vunpack.c.l.b16 %v121
  %v158 = vunpack.c.l.b16 %v122
  %v159 = vunpack.c.l.b16 %v123
  %v160 = vunpack.c.l.b16 %v124
  %v161 = vunpack.c.l.b16 %v125
  %v162 = vunpack.c.l.b16 %v126
  %v163 = vunpack.c.l.b16 %v127
  %v164 = vunpack.c.l.b16 %v128
  %v165 = vunpack.c.l.b16 %v129
  %v166 = vunpack.c.l.b16 %v130
  %v167 = vunpack.c.l.b16 %v131
  %v168 = vunpack.c.l.b16 %v132
  %v169 = vpack.c.b16 %v154, %v153
  %v170 = vpack.c.b16 %v156, %v155
  %v171 = vpack.c.b16 %v158, %v157
  %v172 = vpack.c.b16 %v160, %v159
  %v173 = vpack.c.b16 %v162, %v161
  %v174 = vpack.c.b16 %v164, %v163
  %v175 = vpack.c.b16 %v166, %v165
  %v176 = vpack.c.b16 %v168, %v167
  %185 = vmatpush.bf16.msra.mxu0 %v176
  %186 = vmatpush.bf16.msra.mxu0 %v175
  %187 = vmatpush.bf16.msra.mxu0 %v174
  %188 = vmatpush.bf16.msra.mxu0 %v173
  %189 = vmatpush.bf16.msra.mxu0 %v172
  %190 = vmatpush.bf16.msra.mxu0 %v171
  %191 = vmatpush.bf16.msra.mxu0 %v170
  %192 = vmatpush.bf16.msra.mxu0 %v169
  %193 = vmatmul.bf16.gmra.mxu0 %v116
  %v194 = vpop.f32.mrf.mxu0
  %v195 = vadd.f32 %v135, %v194
  %v196 = vpop.f32.mrf.mxu0
  %197 = vdwg.mxu0
  %v198 = vmax.f32 %v195, 0.0
  %v199 = vpack.c.bf16 %v198, %v198
  %v200 = vld [vmem:[%s3] sm:$0xf]
  %v201 = vld [vmem:[%s3 + $0x4] sm:$0xf]
  %v202 = vld [vmem:[%s3 + $0x8] sm:$0xf]
  %v203 = vld [vmem:[%s3 + $0xc] sm:$0xf]
  %v204 = vld [vmem:[%s3 + $0x10] sm:$0xf]
  %v205 = vld [vmem:[%s3 + $0x14] sm:$0xf]
  %v206 = vld [vmem:[%s3 + $0x18] sm:$0xf]
  %v207 = vld [vmem:[%s3 + $0x1c] sm:$0xf]
  %v208 = vld [vmem:[%s3 + $0x20] sm:$0xf]
  %v209 = vld [vmem:[%s3 + $0x24] sm:$0xf]
  %v210 = vld [vmem:[%s3 + $0x28] sm:$0xf]
  %v211 = vld [vmem:[%s3 + $0x2c] sm:$0xf]
  %v212 = vld [vmem:[%s3 + $0x30] sm:$0xf]
  %v213 = vld [vmem:[%s3 + $0x34] sm:$0xf]
  %v214 = vld [vmem:[%s3 + $0x38] sm:$0xf]
  %v215 = vld [vmem:[%s3 + $0x3c] sm:$0xf]
  %v216 = vld [vmem:[%s7] sm:$0x1]
  %v218 = vperm.slane %v216, 0
  %v236 = vunpack.c.l.b16 %v200
  %v237 = vunpack.c.l.b16 %v201
  %v238 = vunpack.c.l.b16 %v202
  %v239 = vunpack.c.l.b16 %v203
  %v240 = vunpack.c.l.b16 %v204
  %v241 = vunpack.c.l.b16 %v205
  %v242 = vunpack.c.l.b16 %v206
  %v243 = vunpack.c.l.b16 %v207
  %v244 = vunpack.c.l.b16 %v208
  %v245 = vunpack.c.l.b16 %v209
  %v246 = vunpack.c.l.b16 %v210
  %v247 = vunpack.c.l.b16 %v211
  %v248 = vunpack.c.l.b16 %v212
  %v249 = vunpack.c.l.b16 %v213
  %v250 = vunpack.c.l.b16 %v214
  %v251 = vunpack.c.l.b16 %v215
  %v252 = vpack.c.b16 %v237, %v236
  %v253 = vpack.c.b16 %v239, %v238
  %v254 = vpack.c.b16 %v241, %v240
  %v255 = vpack.c.b16 %v243, %v242
  %v256 = vpack.c.b16 %v245, %v244
  %v257 = vpack.c.b16 %v247, %v246
  %v258 = vpack.c.b16 %v249, %v248
  %v259 = vpack.c.b16 %v251, %v250
  %268 = vmatpush.bf16.msra.mxu0 %v259
  %269 = vmatpush.bf16.msra.mxu0 %v258
  %270 = vmatpush.bf16.msra.mxu0 %v257
  %271 = vmatpush.bf16.msra.mxu0 %v256
  %272 = vmatpush.bf16.msra.mxu0 %v255
  %273 = vmatpush.bf16.msra.mxu0 %v254
  %274 = vmatpush.bf16.msra.mxu0 %v253
  %275 = vmatpush.bf16.msra.mxu0 %v252
  %276 = vmatmul.bf16.gmra.mxu0 %v199
  %v277 = vpop.f32.mrf.mxu0
  %v278 = vadd.f32 %v218, %v277
  %v279 = vpop.f32.mrf.mxu0
  %280 = vdwg.mxu0
  %v281 = vmax.f32 %v278, 0.0
  %v282 = vpack.c.bf16 %v281, %v281
  %v283 = vld [vmem:[%s4] sm:$0xf]
  %v284 = vld [vmem:[%s4 + $0x4] sm:$0xf]
  %v285 = vld [vmem:[%s4 + $0x8] sm:$0xf]
  %v286 = vld [vmem:[%s4 + $0xc] sm:$0xf]
  %v287 = vld [vmem:[%s4 + $0x10] sm:$0xf]
  %v288 = vld [vmem:[%s4 + $0x14] sm:$0xf]
  %v289 = vld [vmem:[%s4 + $0x18] sm:$0xf]
  %v290 = vld [vmem:[%s4 + $0x1c] sm:$0xf]
  %v291 = vld [vmem:[%s4 + $0x20] sm:$0xf]
  %v292 = vld [vmem:[%s4 + $0x24] sm:$0xf]
  %v293 = vld [vmem:[%s4 + $0x28] sm:$0xf]
  %v294 = vld [vmem:[%s4 + $0x2c] sm:$0xf]
  %v295 = vld [vmem:[%s4 + $0x30] sm:$0xf]
  %v296 = vld [vmem:[%s4 + $0x34] sm:$0xf]
  %v297 = vld [vmem:[%s4 + $0x38] sm:$0xf]
  %v298 = vld [vmem:[%s4 + $0x3c] sm:$0xf]
  %v299 = vld [vmem:[%s8] sm:$0x1]
  %v301 = vperm.slane %v299, 0
  %v319 = vunpack.c.l.b16 %v283
  %v320 = vunpack.c.l.b16 %v284
  %v321 = vunpack.c.l.b16 %v285
  %v322 = vunpack.c.l.b16 %v286
  %v323 = vunpack.c.l.b16 %v287
  %v324 = vunpack.c.l.b16 %v288
  %v325 = vunpack.c.l.b16 %v289
  %v326 = vunpack.c.l.b16 %v290
  %v327 = vunpack.c.l.b16 %v291
  %v328 = vunpack.c.l.b16 %v292
  %v329 = vunpack.c.l.b16 %v293
  %v330 = vunpack.c.l.b16 %v294
  %v331 = vunpack.c.l.b16 %v295
  %v332 = vunpack.c.l.b16 %v296
  %v333 = vunpack.c.l.b16 %v297
  %v334 = vunpack.c.l.b16 %v298
  %v335 = vpack.c.b16 %v320, %v319
  %v336 = vpack.c.b16 %v322, %v321
  %v337 = vpack.c.b16 %v324, %v323
  %v338 = vpack.c.b16 %v326, %v325
  %v339 = vpack.c.b16 %v328, %v327
  %v340 = vpack.c.b16 %v330, %v329
  %v341 = vpack.c.b16 %v332, %v331
  %v342 = vpack.c.b16 %v334, %v333
  %351 = vmatpush.bf16.msra.mxu0 %v342
  %352 = vmatpush.bf16.msra.mxu0 %v341
  %353 = vmatpush.bf16.msra.mxu0 %v340
  %354 = vmatpush.bf16.msra.mxu0 %v339
  %355 = vmatpush.bf16.msra.mxu0 %v338
  %356 = vmatpush.bf16.msra.mxu0 %v337
  %357 = vmatpush.bf16.msra.mxu0 %v336
  %358 = vmatpush.bf16.msra.mxu0 %v335
  %359 = vmatmul.bf16.gmra.mxu0 %v282
  %v360 = vpop.f32.mrf.mxu0
  %v361 = vadd.f32 %v301, %v360
  %v362 = vpop.f32.mrf.mxu0
  %363 = vdwg.mxu0
  %364 = vst [vmem:[%s9] sm:$0xff] %v361
  // Predicated region
  $region38: #{mlp_forward.1} parent=0 // pred_check
    _
  $region39: #{mlp_forward.1} parent=0 // pred_check_branch
    %366 = sbr.rel (0) target = $region41
  $region40: #{mlp_forward.1} parent=0 // pred_region
    _
  $region41: #{mlp_forward.1} parent=0 // pred_fallthru
    _
  // Predicated region
  $region42: #{mlp_forward.1} parent=0 // pred_check
    _
  $region43: #{mlp_forward.1} parent=0 // pred_check_branch
    %368 = sbr.rel (0) target = $region45
  $region44: #{mlp_forward.1} parent=0 // pred_region
    _
  $region45: #{mlp_forward.1} parent=0 // pred_fallthru
    _

</llo_original>
